<compile_context>
chip_gen: v5e
topology: v5e:2x2
jax: 0.10.0
libtpu: 0.0.40
codegen_flags: <defaults>
</compile_context>

<pallas_src>
import math

import jax
import jax.numpy as jnp
from jax import lax
from jax.experimental import pallas as pl
from jax.experimental.pallas import tpu as pltpu


def _make_convblock_kernel(last_layer: bool, eps: float, num_pt: int,
                           p_tile: int, true_p: int):
    inv_p = 1.0 / float(true_p)

    def kernel(patch_ref, w_ref, o_ref, s_ref, ss_ref):
        # patch_ref : (K, p_tile)        bf16/f32, streamed over the P axis
        # w_ref     : (c_tile, K)        bf16/f32, resident per C tile
        # o_ref     : (c_tile, P_pad)    f32, resident across the P axis
        # s_ref     : (c_tile, 1)        f32 running per-channel sum
        # ss_ref    : (c_tile, 1)        f32 running per-channel sum of squares
        t = pl.program_id(2)

        @pl.when(t == 0)
        def _():
            s_ref[...] = jnp.zeros_like(s_ref)
            ss_ref[...] = jnp.zeros_like(ss_ref)

        # Conv-as-matmul on the MXU, f32 accumulation; lane dim = P tile.
        y = jnp.dot(w_ref[...], patch_ref[...],
                    preferred_element_type=jnp.float32)       # (c_tile, p_tile)

        # Park the raw conv tile directly in the resident output slab
        # (128-aligned dynamic lane slice; no duplicate scratch copy).
        off = pl.multiple_of(t * p_tile, 128)
        o_ref[:, pl.ds(off, p_tile)] = y

        # Streamed InstanceNorm statistics.  Zero-pad columns contribute 0.
        s_ref[...] += jnp.sum(y, axis=1, keepdims=True)
        ss_ref[...] += jnp.sum(y * y, axis=1, keepdims=True)

        # Epilogue on the last P tile: one normalize+activate pass, in place.
        @pl.when(t == num_pt - 1)
        def _():
            mean = s_ref[...] * inv_p
            var = jnp.maximum(ss_ref[...] * inv_p - mean * mean, 0.0)
            inv_std = lax.rsqrt(var + eps)

            def body(tt, carry):
                o2 = pl.multiple_of(tt * p_tile, 128)
                yn = (o_ref[:, pl.ds(o2, p_tile)] - mean) * inv_std
                if last_layer:
                    res = (jnp.tanh(yn) + 1.0) * 0.5
                else:
                    res = jnp.maximum(yn, 0.0)
                o_ref[:, pl.ds(o2, p_tile)] = res
                return carry

            lax.fori_loop(0, num_pt, body, 0)

    return kernel


def _plan_tiles(c_out, K, p_pad, in_itemsize, *, c_tile=None, p_tile=None,
                patch_buffers=2):
    """Pick (c_tile, p_tile, vmem_limit) from the actual VMEM footprint."""
    try:
        cap = int(pltpu.get_tpu_info().vmem_capacity_bytes)
    except Exception:
        cap = 64 * 1024 * 1024            # v7x floor; safe on every generation
    cap = min(cap, 128 * 1024 * 1024)
    budget = int(cap * 0.75)

    if c_tile is None:
        c_tile = c_out
        if c_out % 8 == 0:
            # Shrink the channel tile until the resident f32 slab fits.
            while (c_tile > 8 and c_tile % 2 == 0 and (c_tile // 2) % 8 == 0
                   and c_tile * p_pad * 4 > int(budget * 0.6)):
                c_tile //= 2
    else:
        assert c_tile == c_out or (c_out % c_tile == 0 and c_tile % 8 == 0), (
            c_out, c_tile)

    slab = c_tile * p_pad * 4                     # resident f32 output slab
    w_bytes = 2 * c_tile * K * in_itemsize        # (double-buffered) weights

    if p_tile is None:
        remaining = max(budget - slab - w_bytes, 2 * 1024 * 1024)
        p_tile = 128
        for cand in (2048, 1024, 512, 256, 128):
            if p_pad % cand == 0 and patch_buffers * K * cand * in_itemsize <= remaining:
                p_tile = cand
                break
    else:
        assert p_tile % 128 == 0 and p_pad % p_tile == 0, (p_pad, p_tile)

    patch_bytes = patch_buffers * K * p_tile * in_itemsize
    footprint = slab + w_bytes + patch_bytes + (1 << 20)
    vmem_limit = max(32 * 1024 * 1024, footprint + (4 << 20))
    vmem_limit = min(vmem_limit, cap - (2 << 20))
    return c_tile, p_tile, int(vmem_limit)


def conv_block_forward(x, weight, bias=None, *, stride, padding=None,
                       last_layer=False, eps=1e-5,
                       compute_dtype=jnp.bfloat16, p_tile=None, c_tile=None,
                       patch_buffers=2):
    """x: (N, C_in, H, W); weight: (C_out, C_in, k, k). Returns NCHW f32.

    `bias` is accepted for API parity with nn.Conv2d but is NOT applied: the
    following InstanceNorm2d (affine=False) subtracts the per-channel mean,
    which cancels a per-channel bias exactly.
    """
    del bias
    N, C_in, H, W = x.shape
    C_out, _, k, _ = weight.shape
    s = stride
    if padding is None:
        padding = math.ceil((k / s - 1) * (s / 2))
    p = padding

    H_out = (H + 2 * p - k) // s + 1
    W_out = (W + 2 * p - k) // s + 1
    P = H_out * W_out
    P_pad = ((P + 127) // 128) * 128
    K = C_in * k * k

    # ---- patch extraction (plain-JAX glue), directly in (N, K, P) layout ----
    # TODO(synk): build patches in-kernel from a DMA'd padded row band to kill
    # the k^2 im2col HBM amplification.
    xp = jnp.pad(x, ((0, 0), (0, 0), (p, p), (p, p)))
    rows = []
    for ci in range(C_in):            # ordering matches PyTorch weight flatten
        for kh in range(k):
            for kw in range(k):
                rows.append(
                    xp[:, ci, kh:kh + s * H_out:s, kw:kw + s * W_out:s]
                    .reshape(N, P))
    patches = jnp.stack(rows, axis=1)                          # (N, K, P)
    if P_pad != P:
        patches = jnp.pad(patches, ((0, 0), (0, 0), (0, P_pad - P)))
    patches = patches.astype(compute_dtype)

    # Flatten weight to (C_out, K); (C_in, kh, kw) ordering matches `rows`.
    w_mat = weight.reshape(C_out, K).astype(compute_dtype)

    itemsize = jnp.dtype(compute_dtype).itemsize
    c_tile, p_tile, vmem_limit = _plan_tiles(
        C_out, K, P_pad, itemsize, c_tile=c_tile, p_tile=p_tile,
        patch_buffers=patch_buffers)
    num_pt = P_pad // p_tile
    num_ct = C_out // c_tile

    kernel = _make_convblock_kernel(last_layer, eps, num_pt, p_tile, P)

    patch_spec_kwargs = {}
    if patch_buffers > 2:             # optional deeper pipelining on patches
        patch_spec_kwargs["pipeline_mode"] = pl.Buffered(patch_buffers)
    patch_spec = pl.BlockSpec((None, K, p_tile), lambda n, c, t: (n, 0, t),
                              **patch_spec_kwargs)

    out = pl.pallas_call(
        kernel,
        out_shape=jax.ShapeDtypeStruct((N, C_out, P_pad), jnp.float32),
        grid_spec=pltpu.PrefetchScalarGridSpec(
            num_scalar_prefetch=0,
            grid=(N, num_ct, num_pt),
            in_specs=[
                patch_spec,                                      # streamed P tiles
                pl.BlockSpec((c_tile, K), lambda n, c, t: (c, 0)),  # weights
            ],
            # Resident (c_tile, P_pad) slab per (image, channel-tile); written
            # back to HBM once after the epilogue.
            out_specs=pl.BlockSpec((None, c_tile, P_pad),
                                   lambda n, c, t: (n, c, 0)),
            scratch_shapes=[pltpu.VMEM((c_tile, 1), jnp.float32),
                            pltpu.VMEM((c_tile, 1), jnp.float32)],
        ),
        compiler_params=pltpu.CompilerParams(
            dimension_semantics=("parallel", "parallel", "arbitrary"),
            vmem_limit_bytes=vmem_limit,
        ),
    )(patches, w_mat)

    # (N, C_out, P_pad) -> drop pad columns -> NCHW: pure reshape, no transpose.
    return out[:, :, :P].reshape(N, C_out, H_out, W_out)


def _reference(x, weight, bias, *, stride, padding, last_layer, eps=1e-5):
    """Plain-JAX reference (includes the conv bias, which InstanceNorm cancels)."""
    y = lax.conv_general_dilated(
        x, weight, window_strides=(stride, stride),
        padding=[(padding, padding), (padding, padding)],
        dimension_numbers=("NCHW", "OIHW", "NCHW"),
    ) + bias.reshape(1, -1, 1, 1)
    mean = jnp.mean(y, axis=(2, 3), keepdims=True)
    var = jnp.mean((y - mean) ** 2, axis=(2, 3), keepdims=True)
    yn = (y - mean) / jnp.sqrt(var + eps)
    if last_layer:
        return (jnp.tanh(yn) + 1.0) / 2.0
    return jnp.maximum(yn, 0.0)


if __name__ == "__main__":
    N, C_in, H, W = 2, 4, 16, 16
    C_out, k, stride = 8, 3, 1
    padding = math.ceil((k / stride - 1) * (stride / 2))  # PyTorch default

    key = jax.random.PRNGKey(0)
    kx, kw, kb, kw2, kb2 = jax.random.split(key, 5)
    x = jax.random.normal(kx, (N, C_in, H, W), dtype=jnp.float32)
    fan_in = C_in * k * k
    bound = 1.0 / math.sqrt(fan_in)
    weight = jax.random.uniform(kw, (C_out, C_in, k, k), jnp.float32, -bound, bound)
    bias = jax.random.uniform(kb, (C_out,), jnp.float32, -bound, bound)

    ref_relu = _reference(x, weight, bias, stride=stride, padding=padding,
                          last_layer=False)
    ref_tanh = _reference(x, weight, bias, stride=stride, padding=padding,
                          last_layer=True)

    # 1) f32 compute, forced multi-P-tile path (streamed stats + fori epilogue).
    out = jax.block_until_ready(conv_block_forward(
        x, weight, bias, stride=stride, padding=padding, last_layer=False,
        compute_dtype=jnp.float32, p_tile=128))
    assert out.shape == ref_relu.shape == (N, C_out, H, W)
    assert jnp.allclose(out, ref_relu, atol=1e-4, rtol=1e-4), "relu path mismatch"

    # 2) f32 compute, auto tiles, tanh head.
    out2 = jax.block_until_ready(conv_block_forward(
        x, weight, bias, stride=stride, padding=padding, last_layer=True,
        compute_dtype=jnp.float32))
    assert jnp.allclose(out2, ref_tanh, atol=1e-4, rtol=1e-4), "tanh path mismatch"

    # 3) bf16 MXU operands (f32 accumulation + f32 epilogue): looser tolerance.
    out3 = jax.block_until_ready(conv_block_forward(
        x, weight, bias, stride=stride, padding=padding, last_layer=False,
        compute_dtype=jnp.bfloat16, p_tile=128))
    assert jnp.allclose(out3, ref_relu, atol=5e-2, rtol=0.0), "bf16 path mismatch"

    # 4) Multi-C_out-tile path (parallel channel axis, per-tile stats).
    C_out2 = 16
    weight2 = jax.random.uniform(kw2, (C_out2, C_in, k, k), jnp.float32, -bound, bound)
    bias2 = jax.random.uniform(kb2, (C_out2,), jnp.float32, -bound, bound)
    ref4 = _reference(x, weight2, bias2, stride=stride, padding=padding,
                      last_layer=False)
    out4 = jax.block_until_ready(conv_block_forward(
        x, weight2, bias2, stride=stride, padding=padding, last_layer=False,
        compute_dtype=jnp.float32, p_tile=128, c_tile=8))
    assert jnp.allclose(out4, ref4, atol=1e-4, rtol=1e-4), "c-tile path mismatch"

    # 5) stride=2 (P=64 -> padded to 128; pad columns excluded from the stats).
    stride2 = 2
    pad2 = math.ceil((k / stride2 - 1) * (stride2 / 2))
    ref5 = _reference(x, weight, bias, stride=stride2, padding=pad2,
                      last_layer=False)
    out5 = jax.block_until_ready(conv_block_forward(
        x, weight, bias, stride=stride2, padding=pad2, last_layer=False,
        compute_dtype=jnp.float32))
    assert out5.shape == ref5.shape
    assert jnp.allclose(out5, ref5, atol=1e-4, rtol=1e-4), "stride-2 path mismatch"

    print("KERNEL_OK")
</pallas_src>

<mosaic_0001>
module attributes {stable_mosaic.version = 11 : i64} {
  func.func @kernel(%arg0: i32, %arg1: i32, %arg2: i32, %arg3: memref<1x36x128xf32, #tpu.memory_space<vmem>>, %arg4: memref<8x36xf32, #tpu.memory_space<vmem>>, %arg5: memref<1x8x256xf32, #tpu.memory_space<vmem>>, %arg6: memref<8x1xf32, #tpu.memory_space<vmem>>, %arg7: memref<8x1xf32, #tpu.memory_space<vmem>>) attributes {dimension_semantics = [#tpu.dimension_semantics<parallel>, #tpu.dimension_semantics<parallel>, #tpu.dimension_semantics<arbitrary>], iteration_bounds = array<i64: 2, 1, 2>, scalar_prefetch = 0 : i64, scratch_operands = 2 : i64, tpu.core_type = #tpu.core_type<tc>, window_params = [{transform_indices = @transform_0, window_bounds = array<i64: 1, 36, 128>}, {transform_indices = @transform_1, window_bounds = array<i64: 8, 36>}, {transform_indices = @transform_2, window_bounds = array<i64: 1, 8, 256>}]} {
    %c0_i32 = arith.constant 0 : i32
    %0 = arith.cmpi eq, %arg2, %c0_i32 : i32
    %1 = arith.extui %0 : i1 to i32
    %c0_i32_0 = arith.constant 0 : i32
    %2 = arith.cmpi ne, %1, %c0_i32_0 : i32
    scf.if %2 {
      %cst_18 = arith.constant 0.000000e+00 : f32
      %27 = vector.broadcast %cst_18 : f32 to vector<8x1xf32>
      %c0_19 = arith.constant 0 : index
      %c0_20 = arith.constant 0 : index
      %28 = vector.load %arg6[%c0_19, %c0_20] : memref<8x1xf32, #tpu.memory_space<vmem>>, vector<8x1xf32>
      tpu.vector_store %arg6[%c0_19, %c0_20], %27 {strides = array<i32>} : memref<8x1xf32, #tpu.memory_space<vmem>>, vector<8x1xf32>,
      %cst_21 = arith.constant 0.000000e+00 : f32
      %29 = vector.broadcast %cst_21 : f32 to vector<8x1xf32>
      %c0_22 = arith.constant 0 : index
      %c0_23 = arith.constant 0 : index
      %30 = vector.load %arg7[%c0_22, %c0_23] : memref<8x1xf32, #tpu.memory_space<vmem>>, vector<8x1xf32>
      tpu.vector_store %arg7[%c0_22, %c0_23], %29 {strides = array<i32>} : memref<8x1xf32, #tpu.memory_space<vmem>>, vector<8x1xf32>,
    } else {
    }
    %c0 = arith.constant 0 : index
    %c0_1 = arith.constant 0 : index
    %3 = vector.load %arg4[%c0, %c0_1] : memref<8x36xf32, #tpu.memory_space<vmem>>, vector<8x36xf32>
    %c0_2 = arith.constant 0 : index
    %c0_3 = arith.constant 0 : index
    %c0_4 = arith.constant 0 : index
    %4 = vector.load %arg3[%c0_2, %c0_3, %c0_4] : memref<1x36x128xf32, #tpu.memory_space<vmem>>, vector<1x36x128xf32>
    %5 = vector.shape_cast %4 : vector<1x36x128xf32> to vector<36x128xf32>
    %cst = arith.constant dense<0.000000e+00> : vector<8x128xf32>
    %6 = tpu.matmul %3, %5, %cst {dimension_numbers = #tpu.dot_dimension_numbers<[1], [0], [0], [1], [0, 0, 1, 1], [], []>} : vector<8x36xf32>, vector<36x128xf32>, vector<8x128xf32> -> vector<8x128xf32>
    %c128_i32 = arith.constant 128 : i32
    %7 = arith.muli %arg2, %c128_i32 : i32
    %8 = tpu.assume_multiple %7, 128 : i32
    %c0_5 = arith.constant 0 : index
    %c0_6 = arith.constant 0 : index
    %9 = arith.index_cast %8 : i32 to index
    %10 = vector.load %arg5[%c0_5, %c0_6, %9] : memref<1x8x256xf32, #tpu.memory_space<vmem>>, vector<1x8x128xf32>
    %11 = vector.shape_cast %10 : vector<1x8x128xf32> to vector<8x128xf32>
    %12 = vector.shape_cast %6 : vector<8x128xf32> to vector<1x8x128xf32>
    tpu.vector_store %arg5[%c0_5, %c0_6, %9], %12 {strides = array<i32>} : memref<1x8x256xf32, #tpu.memory_space<vmem>>, vector<1x8x128xf32>,
    %c0_7 = arith.constant 0 : index
    %c0_8 = arith.constant 0 : index
    %13 = vector.load %arg6[%c0_7, %c0_8] : memref<8x1xf32, #tpu.memory_space<vmem>>, vector<8x1xf32>
    %cst_9 = arith.constant dense<0.000000e+00> : vector<8xf32>
    %14 = vector.multi_reduction <add>, %6, %cst_9 [1] : vector<8x128xf32> to vector<8xf32>
    %15 = vector.shape_cast %14 : vector<8xf32> to vector<8x1xf32>
    %16 = arith.addf %13, %15 : vector<8x1xf32>
    %c0_10 = arith.constant 0 : index
    %c0_11 = arith.constant 0 : index
    %17 = vector.load %arg6[%c0_10, %c0_11] : memref<8x1xf32, #tpu.memory_space<vmem>>, vector<8x1xf32>
    tpu.vector_store %arg6[%c0_10, %c0_11], %16 {strides = array<i32>} : memref<8x1xf32, #tpu.memory_space<vmem>>, vector<8x1xf32>,
    %c0_12 = arith.constant 0 : index
    %c0_13 = arith.constant 0 : index
    %18 = vector.load %arg7[%c0_12, %c0_13] : memref<8x1xf32, #tpu.memory_space<vmem>>, vector<8x1xf32>
    %19 = arith.mulf %6, %6 : vector<8x128xf32>
    %cst_14 = arith.constant dense<0.000000e+00> : vector<8xf32>
    %20 = vector.multi_reduction <add>, %19, %cst_14 [1] : vector<8x128xf32> to vector<8xf32>
    %21 = vector.shape_cast %20 : vector<8xf32> to vector<8x1xf32>
    %22 = arith.addf %18, %21 : vector<8x1xf32>
    %c0_15 = arith.constant 0 : index
    %c0_16 = arith.constant 0 : index
    %23 = vector.load %arg7[%c0_15, %c0_16] : memref<8x1xf32, #tpu.memory_space<vmem>>, vector<8x1xf32>
    tpu.vector_store %arg7[%c0_15, %c0_16], %22 {strides = array<i32>} : memref<8x1xf32, #tpu.memory_space<vmem>>, vector<8x1xf32>,
    %c1_i32 = arith.constant 1 : i32
    %24 = arith.cmpi eq, %arg2, %c1_i32 : i32
    %25 = arith.extui %24 : i1 to i32
    %c0_i32_17 = arith.constant 0 : i32
    %26 = arith.cmpi ne, %25, %c0_i32_17 : i32
    scf.if %26 {
      %c0_18 = arith.constant 0 : index
      %c0_19 = arith.constant 0 : index
      %27 = vector.load %arg6[%c0_18, %c0_19] : memref<8x1xf32, #tpu.memory_space<vmem>>, vector<8x1xf32>
      %cst_20 = arith.constant 3.906250e-03 : f32
      %28 = vector.broadcast %cst_20 : f32 to vector<8x1xf32>
      %29 = arith.mulf %27, %28 : vector<8x1xf32>
      %c0_21 = arith.constant 0 : index
      %c0_22 = arith.constant 0 : index
      %30 = vector.load %arg7[%c0_21, %c0_22] : memref<8x1xf32, #tpu.memory_space<vmem>>, vector<8x1xf32>
      %cst_23 = arith.constant 3.906250e-03 : f32
      %31 = vector.broadcast %cst_23 : f32 to vector<8x1xf32>
      %32 = arith.mulf %30, %31 : vector<8x1xf32>
      %33 = arith.mulf %29, %29 : vector<8x1xf32>
      %34 = arith.subf %32, %33 : vector<8x1xf32>
      %cst_24 = arith.constant 0.000000e+00 : f32
      %35 = vector.broadcast %cst_24 : f32 to vector<8x1xf32>
      %36 = arith.maximumf %34, %35 : vector<8x1xf32>
      %cst_25 = arith.constant 9.99999974E-6 : f32
      %37 = vector.broadcast %cst_25 : f32 to vector<8x1xf32>
      %38 = arith.addf %36, %37 : vector<8x1xf32>
      %39 = math.rsqrt %38 : vector<8x1xf32>
      %c0_i32_26 = arith.constant 0 : i32
      %c2_i32 = arith.constant 2 : i32
      %40 = arith.addi %c0_i32_26, %c2_i32 : i32
      %c1_i32_27 = arith.constant 1 : i32
      scf.for %arg8 = %c0_i32_26 to %40 step %c1_i32_27  : i32 {
        %c128_i32_29 = arith.constant 128 : i32
        %41 = arith.muli %arg8, %c128_i32_29 : i32
        %42 = tpu.assume_multiple %41, 128 : i32
        %c0_30 = arith.constant 0 : index
        %c0_31 = arith.constant 0 : index
        %43 = arith.index_cast %42 : i32 to index
        %44 = vector.load %arg5[%c0_30, %c0_31, %43] : memref<1x8x256xf32, #tpu.memory_space<vmem>>, vector<1x8x128xf32>
        %45 = vector.shape_cast %44 : vector<1x8x128xf32> to vector<8x128xf32>
        %46 = vector.broadcast %29 : vector<8x1xf32> to vector<8x128xf32>
        %47 = arith.subf %45, %46 : vector<8x128xf32>
        %48 = vector.broadcast %39 : vector<8x1xf32> to vector<8x128xf32>
        %49 = arith.mulf %47, %48 : vector<8x128xf32>
        %cst_32 = arith.constant 0.000000e+00 : f32
        %50 = vector.broadcast %cst_32 : f32 to vector<8x128xf32>
        %51 = arith.maximumf %49, %50 : vector<8x128xf32>
        %c0_33 = arith.constant 0 : index
        %c0_34 = arith.constant 0 : index
        %52 = arith.index_cast %42 : i32 to index
        %53 = vector.load %arg5[%c0_33, %c0_34, %52] : memref<1x8x256xf32, #tpu.memory_space<vmem>>, vector<1x8x128xf32>
        %54 = vector.shape_cast %53 : vector<1x8x128xf32> to vector<8x128xf32>
        %55 = vector.shape_cast %51 : vector<8x128xf32> to vector<1x8x128xf32>
        tpu.vector_store %arg5[%c0_33, %c0_34, %52], %55 {strides = array<i32>} : memref<1x8x256xf32, #tpu.memory_space<vmem>>, vector<1x8x128xf32>,
      }
      %c2_i32_28 = arith.constant 2 : i32
    } else {
    }
    return
  }
  func.func @transform_0(%arg0: i32, %arg1: i32, %arg2: i32) -> (i32, i32, i32) {
    %c0_i32 = arith.constant 0 : i32
    %c0_i32_0 = arith.constant 0 : i32
    return %arg0, %c0_i32, %arg2 : i32, i32, i32
  }
  func.func @transform_1(%arg0: i32, %arg1: i32, %arg2: i32) -> (i32, i32) {
    %c0_i32 = arith.constant 0 : i32
    %c0_i32_0 = arith.constant 0 : i32
    return %arg1, %c0_i32 : i32, i32
  }
  func.func @transform_2(%arg0: i32, %arg1: i32, %arg2: i32) -> (i32, i32, i32) {
    %c0_i32 = arith.constant 0 : i32
    %c0_i32_0 = arith.constant 0 : i32
    return %arg0, %arg1, %c0_i32 : i32, i32, i32
  }
}

</mosaic_0001>

<llo_original>
// kernel: tpu_custom_call.1
$region0: #{tpu_custom_call.1}
  #allocation0 [shape = 'u32[]', space=smem, size = 0x4, offset = 0x4, fixed_abs, tag = 'smem constant byte address 0x4 - core index']
  #allocation1 [shape = 'u32[72,128]{1,0:T(1,128)}', space=vmem, size = 0x9000, scoped, tag = 'internal scratch']
  #allocation2 [shape = 'f32[8,1]{1,0:T(8,128)}', space=vmem, size = 0x1000, scoped, tag = 'scratch operand']
  #allocation3 [shape = 'f32[8,1]{1,0:T(8,128)}', space=vmem, size = 0x1000, scoped, tag = 'scratch operand']
  %s0 = inlined_call_operand.vmem [shape: f32[2,36,256], index: 0, kind: input, shape index: {}]
  %s1 = inlined_call_operand.vmem [shape: f32[8,36], index: 1, kind: input, shape index: {}]
  %s2 = inlined_call_operand.hbm [shape: f32[2,8,256], index: 2, kind: output, shape index: {}]
  %s3 = sld [smem:[#allocation0]]
  $region94: #{tpu_custom_call.1} parent=0
    _
  %s5 = ssub.s32 1, %s3
  %s6 = scalar_select 0, %s5, %s3
  $region1: #{tpu_custom_call.1} parent=0
    #allocation4 [shape = 'u8[40960]{0}', space=vmem, size = 0xa000, scoped, tag = 'input window, operand 0']
    #allocation5 [shape = 'u8[16384]{0}', space=vmem, size = 0x4000, scoped, tag = 'output window, operand 0']
    #allocation6 [shape = 's32[2]{0}', space=sflag, size = 0x8, scoped, tag = 'scoped memory for tpu_custom_call.1']
    %7 = vsyncpa [#allocation6], 0
    %s8 = scalar_lea.sflag [#allocation6], 1
    %9 = vsyncpa %s8, 0
    loop: start=0, step=1, limit=6
    $region2: #{tpu_custom_call.1} parent=1 // loop_pre_header
      _
    $region3: #{tpu_custom_call.1} parent=1 // loop_header
      %s11 = sphi 0, %s15
      %p12 = scmp.ge.s32.totalorder %s11, 6
      %s18 = sphi 0, %s37
      %s19 = sphi 0, %s33
      %s20 = sphi 0, %s29
      %s21 = sphi 0, %s18
      %s22 = sphi 0, %s19
      %s23 = sphi 0, %s20
      %s24 = sphi 0, %s21
      %s25 = sphi 0, %s22
      %s26 = sphi 0, %s23
      %s42 = sphi 0, %s44
      %s45 = sphi 0, %s42
      %s46 = sphi 0, %s45
      %s62 = sphi 0, %s46
      %s68 = sphi 0, %s70
      %s71 = sphi 0, %s68
      %s72 = sphi 0, %s71
      %s88 = sphi 0, %s72
      %s96 = sphi 0, %s98
      %s99 = sphi 0, %s96
      %s100 = sphi 0, %s99
      %s116 = sphi 0, %s100
    $region4: #{tpu_custom_call.1} parent=1 // loop_header_branch
      %14 = sbr.rel (%p12) target = $region8
    $region5: #{tpu_custom_call.1} parent=1 // loop_body
      %s16 = ssub.s32 %s11, 1
      %s17 = ssub.s32 %s11, 2
      %s27 = sadd.s32 1, %s20
      %p28 = scmp.ge.s32.totalorder %s27, 2
      %s29 = scalar_select %p28, 0, %s27
      %s30 = sadd.s32 1, %s19
      %s31 = scalar_select %p28, %s30, %s19
      %p32 = scmp.ge.s32.totalorder %s31, 1
      %s33 = scalar_select %p32, 0, %s31
      %s34 = sadd.s32 1, %s18
      %s35 = scalar_select %p32, %s34, %s18
      %p36 = scmp.ge.s32.totalorder %s35, 2
      %s37 = scalar_select %p36, 0, %s35
      %s38 = ssub.s32 %s18, %s37
      %s39 = ssub.s32 %s20, %s29
      %s40 = sor.u32 %s38, %s39
      %p41 = scmp.eq.s32.totalorder %s40, 0
      %s43 = sadd.s32 %s42, 1
      %s44 = scalar_select %p41, %s42, %s43
      %p47 = pneg %p41
      %p48 = scmp.eq.s32.totalorder %s11, 3
      %p49 = por %p47, %p48
      %p50 = scmp.ne.s32.totalorder %s42, %s45
      %p51 = scmp.eq.s32.totalorder %s11, 0
      %p52 = por %p50, %p51
      %p53 = scmp.ne.s32.totalorder %s42, %s45
      %p54 = scmp.eq.s32.totalorder %s16, 3
      %p55 = por %p53, %p54
      %p56 = scmp.ne.s32.totalorder %s45, %s46
      %p57 = scmp.eq.s32.totalorder %s16, 0
      %p58 = por %p56, %p57
      %p59 = scmp.ne.s32.totalorder %s45, %s46
      %p60 = scmp.eq.s32.totalorder %s17, 3
      %p61 = por %p59, %p60
      %p63 = scmp.ne.s32.totalorder %s46, %s62
      %p64 = scmp.eq.s32.totalorder %s17, 0
      %p65 = por %p63, %p64
      %s66 = ssub.s32 %s19, %s33
      %p67 = scmp.eq.s32.totalorder %s66, 0
      %s69 = sadd.s32 %s68, 1
      %s70 = scalar_select %p67, %s68, %s69
      %p73 = pneg %p67
      %p74 = scmp.eq.s32.totalorder %s11, 3
      %p75 = por %p73, %p74
      %p76 = scmp.ne.s32.totalorder %s68, %s71
      %p77 = scmp.eq.s32.totalorder %s11, 0
      %p78 = por %p76, %p77
      %p79 = scmp.ne.s32.totalorder %s68, %s71
      %p80 = scmp.eq.s32.totalorder %s16, 3
      %p81 = por %p79, %p80
      %p82 = scmp.ne.s32.totalorder %s71, %s72
      %p83 = scmp.eq.s32.totalorder %s16, 0
      %p84 = por %p82, %p83
      %p85 = scmp.ne.s32.totalorder %s71, %s72
      %p86 = scmp.eq.s32.totalorder %s17, 3
      %p87 = por %p85, %p86
      %p89 = scmp.ne.s32.totalorder %s72, %s88
      %p90 = scmp.eq.s32.totalorder %s17, 0
      %p91 = por %p89, %p90
      %s92 = ssub.s32 %s18, %s37
      %s93 = ssub.s32 %s19, %s33
      %s94 = sor.u32 %s92, %s93
      %p95 = scmp.eq.s32.totalorder %s94, 0
      %s97 = sadd.s32 %s96, 1
      %s98 = scalar_select %p95, %s96, %s97
      %p101 = pneg %p95
      %p102 = scmp.eq.s32.totalorder %s11, 3
      %p103 = por %p101, %p102
      %p104 = scmp.ne.s32.totalorder %s96, %s99
      %p105 = scmp.eq.s32.totalorder %s11, 0
      %p106 = por %p104, %p105
      %p107 = scmp.ne.s32.totalorder %s96, %s99
      %p108 = scmp.eq.s32.totalorder %s16, 3
      %p109 = por %p107, %p108
      %p110 = scmp.ne.s32.totalorder %s99, %s100
      %p111 = scmp.eq.s32.totalorder %s16, 0
      %p112 = por %p110, %p111
      %p113 = scmp.ne.s32.totalorder %s99, %s100
      %p114 = scmp.eq.s32.totalorder %s17, 3
      %p115 = por %p113, %p114
      %p117 = scmp.ne.s32.totalorder %s100, %s116
      %p118 = scmp.eq.s32.totalorder %s17, 0
      %p119 = por %p117, %p118
      %p120 = scmp.le.s32.totalorder 1, %s11
      %p121 = scmp.lt.s32.totalorder %s11, 5
      %p122 = pnand %p120, %p121
      %p123 = pneg %p122
      // Predicated region
      $region9: #{tpu_custom_call.1} parent=5 // pred_check
        _
      $region10: #{tpu_custom_call.1} parent=5 // pred_check_branch
        %125 = sbr.rel (%p122) target = $region12
      $region11: #{tpu_custom_call.1} parent=5 // pred_region
        %s126 = ssub.s32 %s11, 1
        // Predicated region
        $region13: #{tpu_custom_call.1} parent=11 // pred_check
          %p127 = pneg %p84
        $region14: #{tpu_custom_call.1} parent=11 // pred_check_branch
          %129 = sbr.rel (%p127) target = $region16
        $region15: #{tpu_custom_call.1} parent=11 // pred_region
          %p130 = scmp.lt.s32.totalorder %s22, 0
          %s131 = scalar_select %p130, %s22, 0
          %s132 = smul.addr %s131, 8
          %s133 = scalar_lea.vmem %s1, %s132
        $region16: #{tpu_custom_call.1} parent=11 // pred_fallthru
          _
      $region12: #{tpu_custom_call.1} parent=5 // pred_fallthru
        _
      %p134 = scmp.lt.s32.totalorder %s11, 4
      // Predicated region
      $region17: #{tpu_custom_call.1} parent=5 // pred_check
        %p135 = pneg %p134
      $region18: #{tpu_custom_call.1} parent=5 // pred_check_branch
        %137 = sbr.rel (%p135) target = $region20
      $region19: #{tpu_custom_call.1} parent=5 // pred_region
        // Predicated region
        $region21: #{tpu_custom_call.1} parent=19 // pred_check
          %p138 = pneg %p52
        $region22: #{tpu_custom_call.1} parent=19 // pred_check_branch
          %140 = sbr.rel (%p138) target = $region24
        $region23: #{tpu_custom_call.1} parent=19 // pred_region
          %s141 = sand.u32 %s42, 1
          %s142 = sand.u32 %s42, 1
          %s143 = smul.addr %s142, 40
          %s144 = scalar_lea.vmem [#allocation4], %s143
          %s145 = smul.addr %s18, 10
          %s146 = sadd.s32 %s20, %s145
          %s147 = smul.addr %s146, 8
          %s148 = scalar_lea.vmem %s0, %s147
          // Predicated region
          $region25: #{tpu_custom_call.1} parent=23 // pred_check
            _
          $region26: #{tpu_custom_call.1} parent=23 // pred_check_branch
            %150 = sbr.rel (0) target = $region28
          $region27: #{tpu_custom_call.1} parent=23 // pred_region
            // Predicated region
            $region29: #{tpu_custom_call.1} parent=27 // pred_check
              _
            $region30: #{tpu_custom_call.1} parent=27 // pred_check_branch
              %152 = sbr.rel (0) target = $region32
            $region31: #{tpu_custom_call.1} parent=27 // pred_region
              // Predicated region
              $region44: #{tpu_custom_call.1} parent=31 // pred_check
                _
              $region45: #{tpu_custom_call.1} parent=31 // pred_check_branch
                %176 = sbr.rel (0) target = $region47
              $region46: #{tpu_custom_call.1} parent=31 // pred_region
                loop: start=0, step=1, limit=1
                $region48: #{tpu_custom_call.1} parent=46 // loop_pre_header
                  _
                $region49: #{tpu_custom_call.1} parent=46 // loop_header
                  %s178 = sphi 0, %s182
                  %p179 = scmp.ge.s32.totalorder %s178, 1
                  %s183 = sphi %s148, %s148
                  %s184 = sphi %s144, %s144
                $region50: #{tpu_custom_call.1} parent=46 // loop_header_branch
                  %181 = sbr.rel (%p179) target = $region54
                $region51: #{tpu_custom_call.1} parent=46 // loop_body
                  %v185 = vld [vmem:[%s183] sm:$0xff]
                  %186 = vst [vmem:[%s184] sm:$0xff] %v185
                  %v187 = vld [vmem:[%s183 + $0x10] sm:$0xff]
                  %188 = vst [vmem:[%s184 + $0x8] sm:$0xff] %v187
                  %v189 = vld [vmem:[%s183 + $0x20] sm:$0xff]
                  %190 = vst [vmem:[%s184 + $0x10] sm:$0xff] %v189
                  %v191 = vld [vmem:[%s183 + $0x30] sm:$0xff]
                  %192 = vst [vmem:[%s184 + $0x18] sm:$0xff] %v191
                  %v193 = vld [vmem:[%s183 + $0x40] sm:$0xff]
                  %194 = vst [vmem:[%s184 + $0x20] sm:$0xff] %v193
                $region52: #{tpu_custom_call.1} parent=46 // loop_footer
                  %s182 = sadd.s32 1, %s178
                $region53: #{tpu_custom_call.1} parent=46 // loop_footer_branch
                  %177 = sbr.rel target = $region49
                $region54: #{tpu_custom_call.1} parent=46 // loop_exit
                  _
              $region47: #{tpu_custom_call.1} parent=31 // pred_fallthru
                _
              // Predicated region
              $region55: #{tpu_custom_call.1} parent=31 // pred_check
                _
              $region56: #{tpu_custom_call.1} parent=31 // pred_check_branch
                %196 = sbr.rel target = $region58
              $region57: #{tpu_custom_call.1} parent=31 // pred_region
                _
              $region58: #{tpu_custom_call.1} parent=31 // pred_fallthru
                _
            $region32: #{tpu_custom_call.1} parent=27 // pred_fallthru
              _
            // Predicated region
            $region33: #{tpu_custom_call.1} parent=27 // pred_check
              _
            $region34: #{tpu_custom_call.1} parent=27 // pred_check_branch
              %154 = sbr.rel target = $region36
            $region35: #{tpu_custom_call.1} parent=27 // pred_region
              %s156 = ssub.s32 256, 1
              loop: start=0, step=1, limit=1
              $region37: #{tpu_custom_call.1} parent=35 // loop_pre_header
                _
              $region38: #{tpu_custom_call.1} parent=35 // loop_header
                %s158 = sphi 0, %s162
                %p159 = scmp.ge.s32.totalorder %s158, 1
                %s163 = sphi %s148, %s148
                %s164 = sphi %s144, %s144
              $region39: #{tpu_custom_call.1} parent=35 // loop_header_branch
                %161 = sbr.rel (%p159) target = $region43
              $region40: #{tpu_custom_call.1} parent=35 // loop_body
                %v165 = vld [vmem:[%s163] sm:%s156]
                %166 = vst [vmem:[%s164] sm:%s156] %v165
                %v167 = vld [vmem:[%s163 + $0x10] sm:%s156]
                %168 = vst [vmem:[%s164 + $0x8] sm:%s156] %v167
                %v169 = vld [vmem:[%s163 + $0x20] sm:%s156]
                %170 = vst [vmem:[%s164 + $0x10] sm:%s156] %v169
                %v171 = vld [vmem:[%s163 + $0x30] sm:%s156]
                %172 = vst [vmem:[%s164 + $0x18] sm:%s156] %v171
                %v173 = vld [vmem:[%s163 + $0x40] sm:%s156]
                %174 = vst [vmem:[%s164 + $0x20] sm:%s156] %v173
              $region41: #{tpu_custom_call.1} parent=35 // loop_footer
                %s162 = sadd.s32 1, %s158
              $region42: #{tpu_custom_call.1} parent=35 // loop_footer_branch
                %157 = sbr.rel target = $region38
              $region43: #{tpu_custom_call.1} parent=35 // loop_exit
                _
            $region36: #{tpu_custom_call.1} parent=27 // pred_fallthru
              _
          $region28: #{tpu_custom_call.1} parent=23 // pred_fallthru
            _
          %197 = vnop
        $region24: #{tpu_custom_call.1} parent=19 // pred_fallthru
          _
      $region20: #{tpu_custom_call.1} parent=5 // pred_fallthru
        _
      %p198 = scmp.le.s32.totalorder 1, %s11
      %p199 = scmp.lt.s32.totalorder %s11, 5
      %p200 = pnand %p198, %p199
      %p201 = pneg %p200
      // Predicated region
      $region59: #{tpu_custom_call.1} parent=5 // pred_check
        _
      $region60: #{tpu_custom_call.1} parent=5 // pred_check_branch
        %203 = sbr.rel (%p200) target = $region62
      $region61: #{tpu_custom_call.1} parent=5 // pred_region
        %s204 = ssub.s32 %s11, 1
        %s205 = sand.u32 %s45, 1
        %s206 = sand.u32 %s45, 1
        %s207 = smul.addr %s206, 40
        %s208 = scalar_lea.vmem [#allocation4], %s207
        // Predicated region
        $region63: #{tpu_custom_call.1} parent=61 // pred_check
          %p209 = pneg %p58
        $region64: #{tpu_custom_call.1} parent=61 // pred_check_branch
          %211 = sbr.rel (%p209) target = $region66
        $region65: #{tpu_custom_call.1} parent=61 // pred_region
          _
        $region66: #{tpu_custom_call.1} parent=61 // pred_fallthru
          _
        %s212 = sand.u32 %s45, 1
        %s213 = sand.u32 %s45, 1
        %s214 = smul.addr %s213, 40
        %s215 = scalar_lea.vmem [#allocation4], %s214
        %p216 = pneg %p58
        %p217 = pneg %p55
        %p218 = scmp.lt.s32.totalorder %s22, 0
        %s219 = scalar_select %p218, %s22, 0
        %s220 = smul.addr %s219, 8
        %s221 = scalar_lea.vmem %s1, %s220
        %p222 = pneg %p84
        %p223 = pneg %p81
        %p224 = pneg %p112
        %p225 = pneg %p109
        %s226 = sand.u32 %s99, 1
        %s227 = scalar_lea.sflag [#allocation6], %s226
        %s228 = sand.u32 %s99, 1
        %s229 = smul.addr %s228, 16
        %s230 = scalar_lea.vmem [#allocation5], %s229
        %p231 = scmp.lt.s32.totalorder %s22, 0
        %s232 = scalar_select %p231, %s22, 0
        %s233 = smul.addr %s232, 8
        %s234 = scalar_lea.vmem %s1, %s233
        %p235 = scmp.eq.s32.totalorder %s23, 0
        // Predicated region
        $region67: #{tpu_custom_call.1} parent=61 // pred_check
          %p236 = pneg %p235
        $region68: #{tpu_custom_call.1} parent=61 // pred_check_branch
          %238 = sbr.rel (%p236) target = $region70
        $region69: #{tpu_custom_call.1} parent=61 // pred_region
          %vm239 = vcmask 7168
          %240 = vst.msk [vmem:[#allocation2] sm:$0xff] %vm239, 0.0
          %241 = vst.msk [vmem:[#allocation3] sm:$0xff] %vm239, 0.0
        $region70: #{tpu_custom_call.1} parent=61 // pred_fallthru
          _
        %v242 = vld [vmem:[%s234] sm:$0xff]
        %v243 = vld [vmem:[%s208] sm:$0xff]
        %v244 = vld [vmem:[%s208 + $0x8] sm:$0xff]
        %v245 = vld [vmem:[%s208 + $0x10] sm:$0xff]
        %v246 = vld [vmem:[%s208 + $0x18] sm:$0xff]
        %v247 = vld [vmem:[%s208 + $0x20] sm:$0xf]
        %vm248 = vcmask 293888
        %v250 = vsel %vm248, %v242, 0
        %vm252 = vcmask 1043456
        %v254 = vsel %vm252, %v247, 0
        %256 = vmatpush.msra.mxu0 0.0
        %257 = vmatpush.msra.mxu0 0.0
        %258 = vmatpush.msra.mxu0 0.0
        %259 = vmatpush.msra.mxu0 0.0
        %260 = vmatpush.msra.mxu0 0.0
        %261 = vmatpush.msra.mxu0 0.0
        %262 = vmatpush.msra.mxu0 0.0
        %263 = vmatpush.msra.mxu0 0.0
        %264 = vmatpush.msra.mxu0 0.0
        %265 = vmatpush.msra.mxu0 0.0
        %266 = vmatpush.msra.mxu0 0.0
        %267 = vmatpush.msra.mxu0 %v254
        %268 = vmatpush.msra.mxu0 %v246
        %269 = vmatpush.msra.mxu0 %v245
        %270 = vmatpush.msra.mxu0 %v244
        %271 = vmatpush.msra.mxu0 %v243
        %272 = vmatmul.f32.gmra.mxu0 %v250
        %v273 = vpop.f32.mrf.mxu0
        %v274 = vadd.f32 0.0, %v273
        %275 = vdwg.mxu0
        %s276 = smul.u32 %s23, 128
        %s277 = sshra.s32 %s276, 7
        %s278 = sand.u32 %s276, 127
        %s279 = smul.addr %s277, 8
        %s280 = scalar_lea.vmem %s230, %s279 [#allocation5]
        %281 = vst [vmem:[%s280] sm:$0xff] %v274
        %v282 = vld [vmem:[#allocation2] sm:$0xff]
        %283 = vadd.xlane.f32.xlu0 %v274
        %v284 = vpop.xlane.xlu0 %283
        %v285 = vadd.f32 %v282, %v284
        %vm286 = vcmask 7168
        %287 = vst.msk [vmem:[#allocation2] sm:$0xff] %vm286, %v285
        %v288 = vld [vmem:[#allocation3] sm:$0xff]
        %v289 = vmul.f32 %v274, %v274
        %290 = vadd.xlane.f32.xlu0 %v289
        %v291 = vpop.xlane.xlu0 %290
        %v292 = vadd.f32 %v288, %v291
        %293 = vst.msk [vmem:[#allocation3] sm:$0xff] %vm286, %v292
        %p294 = scmp.eq.s32.totalorder %s23, 1
        // Predicated region
        $region71: #{tpu_custom_call.1} parent=61 // pred_check
          %p295 = pneg %p294
        $region72: #{tpu_custom_call.1} parent=61 // pred_check_branch
          %297 = sbr.rel (%p295) target = $region74
        $region73: #{tpu_custom_call.1} parent=61 // pred_region
          %v298 = vld [vmem:[#allocation2] sm:$0xff]
          %v299 = vmul.f32 %v298, 0.00390625
          %v300 = vld [vmem:[#allocation3] sm:$0xff]
          %v301 = vmul.f32 %v300, 0.00390625
          %v302 = vmul.f32 %v299, %v299
          %v303 = vsub.f32 %v301, %v302
          %v304 = vmax.f32 %v303, 0.0
          %v305 = vadd.f32 %v304, 1e-05
          %v306 = vrsqrt.pop %v305
          %v307 = vmul.f32 %v306, %v305
          %v308 = vmul.f32 %v307, %v306
          %v309 = vmul.f32 0.5, %v308
          %v310 = vsub.f32 1.5, %v309
          %v311 = vmul.f32 %v306, %v310
          %vm312 = vweird.f32 %v305
          %vm313 = vweird.f32 %v306
          %vm314 = vmor %vm312, %vm313
          %v315 = vsel %vm314, %v306, %v311
          loop: start=0, step=1, limit=2
          $region75: #{tpu_custom_call.1} parent=73 // loop_pre_header
            _
          $region76: #{tpu_custom_call.1} parent=73 // loop_header
            %s317 = sphi 0, %s321
            %p318 = scmp.ge.s32.totalorder %s317, 2
          $region77: #{tpu_custom_call.1} parent=73 // loop_header_branch
            %320 = sbr.rel (%p318) target = $region81
          $region78: #{tpu_custom_call.1} parent=73 // loop_body
            %s322 = smul.u32 %s317, 128
            %s323 = sshra.s32 %s322, 7
            %s324 = sand.u32 %s322, 127
            %s325 = smul.addr %s323, 8
            %s326 = scalar_lea.vmem %s230, %s325 [#allocation5]
            %v327 = vld [vmem:[%s326] sm:$0xff]
            %329 = vset.pattern.permute.xlu0 0
            %330 = vperm.xlu0 %329, %v299
            %v331 = vpop.permute.xlu0 %330
            %v333 = vsub.f32 %v327, %v331
            %335 = vset.pattern.permute.xlu0 0
            %336 = vperm.xlu0 %335, %v315
            %v337 = vpop.permute.xlu0 %336
            %v339 = vmul.f32 %v333, %v337
            %v340 = vmax.f32 %v339, 0.0
            %341 = vst [vmem:[%s326] sm:$0xff] %v340
          $region79: #{tpu_custom_call.1} parent=73 // loop_footer
            %s321 = sadd.s32 1, %s317
          $region80: #{tpu_custom_call.1} parent=73 // loop_footer_branch
            %316 = sbr.rel target = $region76
          $region81: #{tpu_custom_call.1} parent=73 // loop_exit
            _
        $region74: #{tpu_custom_call.1} parent=61 // pred_fallthru
          _
        %s342 = sand.u32 %s99, 1
        %s343 = scalar_lea.sflag [#allocation6], %s342
        %s344 = sand.u32 %s99, 1
        %s345 = smul.addr %s344, 16
        %s346 = scalar_lea.vmem [#allocation5], %s345
        // Predicated region
        $region82: #{tpu_custom_call.1} parent=61 // pred_check
          %p347 = pneg %p109
        $region83: #{tpu_custom_call.1} parent=61 // pred_check_branch
          %349 = sbr.rel (%p347) target = $region85
        $region84: #{tpu_custom_call.1} parent=61 // pred_region
          %351 = vsyncadd %s343, 0
          %s352 = smul.addr %s22, 2
          %s353 = smul.addr %s21, 2
          %s354 = sadd.s32 %s352, %s353
          %s355 = smul.addr %s354, 8
          %s356 = scalar_lea.hbm %s2, %s355
          %s358 = sshll.u32 %s346, 4
          %s359 = int_to_ptr.vmem [resolvable:$true] %s358
          %s360 = sshll.u32 %s356, 4
          %s361 = int_to_ptr.hbm [resolvable:$true] %s360
          %363 = dma.vmem_to_hbm [thread:$0]  %s359, 256, %s361, %s343
        $region85: #{tpu_custom_call.1} parent=61 // pred_fallthru
          _
      $region62: #{tpu_custom_call.1} parent=5 // pred_fallthru
        _
      %p364 = scmp.le.s32.totalorder 2, %s11
      // Predicated region
      $region86: #{tpu_custom_call.1} parent=5 // pred_check
        %p365 = pneg %p364
      $region87: #{tpu_custom_call.1} parent=5 // pred_check_branch
        %367 = sbr.rel (%p365) target = $region89
      $region88: #{tpu_custom_call.1} parent=5 // pred_region
        %s368 = ssub.s32 %s11, 2
        // Predicated region
        $region90: #{tpu_custom_call.1} parent=88 // pred_check
          %p369 = pneg %p115
        $region91: #{tpu_custom_call.1} parent=88 // pred_check_branch
          %371 = sbr.rel (%p369) target = $region93
        $region92: #{tpu_custom_call.1} parent=88 // pred_region
          %s372 = sand.u32 %s100, 1
          %s373 = scalar_lea.sflag [#allocation6], %s372
          %s374 = sand.u32 %s100, 1
          %s375 = smul.addr %s374, 16
          %s376 = scalar_lea.vmem [#allocation5], %s375
          %378 = dma.done %s373, 256
        $region93: #{tpu_custom_call.1} parent=88 // pred_fallthru
          _
      $region89: #{tpu_custom_call.1} parent=5 // pred_fallthru
        _
    $region6: #{tpu_custom_call.1} parent=1 // loop_footer
      %s15 = sadd.s32 1, %s11
    $region7: #{tpu_custom_call.1} parent=1 // loop_footer_branch
      %10 = sbr.rel target = $region3
    $region8: #{tpu_custom_call.1} parent=1 // loop_exit
      _
    %379 = vsyncpa [#allocation6], 1
    %s380 = scalar_lea.sflag [#allocation6], 1
    %381 = vsyncpa %s380, 1

</llo_original>
